<compile_context>
chip_gen: v6e
topology: v6e:2x2x1
jax: 0.10.0
libtpu: 0.0.40
codegen_flags: <defaults>
</compile_context>

<pallas_src>
import jax
import jax.numpy as jnp
from jax.experimental import pallas as pl
from jax.experimental.pallas import tpu as pltpu


def _leaky_relu(x, slope=0.2):
    return jnp.where(x > 0, x, slope * x)


def _round_up(x, m):
    return (x + m - 1) // m * m


# ----------------------------------------------------------------------------
# Kernel
# ----------------------------------------------------------------------------
def disc_kernel(x_ref, w1_ref, b1_ref, w2_ref, b2_ref, w3_ref, b3_ref,
                w4_ref, b4_ref, o_ref, acc_ref):
    """Grid = (batch blocks [parallel], K blocks [arbitrary, reduction])."""
    k = pl.program_id(1)

    # ---- Layer 1: streamed K-tiled matmul into the resident accumulator ----
    @pl.when(k == 0)
    def _init():
        acc_ref[...] = jnp.zeros_like(acc_ref)

    # x and W1 share a dtype (cast once in the wrapper) -> no per-step convert.
    acc_ref[...] += jnp.dot(x_ref[...], w1_ref[...],
                            preferred_element_type=jnp.float32)

    # ---- Epilogue: bias + LeakyReLU, then small resident layers 2-4 --------
    @pl.when(k == pl.num_programs(1) - 1)
    def _epilogue():
        h = _leaky_relu(acc_ref[...] + b1_ref[...])
        h = _leaky_relu(jnp.dot(h.astype(w2_ref.dtype), w2_ref[...],
                                preferred_element_type=jnp.float32) + b2_ref[...])
        h = _leaky_relu(jnp.dot(h.astype(w3_ref.dtype), w3_ref[...],
                                preferred_element_type=jnp.float32) + b3_ref[...])
        h = jnp.dot(h.astype(w4_ref.dtype), w4_ref[...],
                    preferred_element_type=jnp.float32) + b4_ref[...]
        o_ref[...] = h.astype(o_ref.dtype)     # lane-dense (TB, 128) store


# ----------------------------------------------------------------------------
# One-time parameter layout conversion (NOT per forward call)
# ----------------------------------------------------------------------------
def prepare_kernel_params(params, *, w1_dtype=jnp.bfloat16,
                          w234_dtype=jnp.float32, lane_pad=128):
    """Convert PyTorch-layout (out, in) params to kernel layout (in, out).

    Do this ONCE (after loading the checkpoint).  bf16 W1 is the default: the
    layer-1 stream is HBM-bandwidth-bound, so halving it is ~2x end to end;
    accumulation stays f32 in-kernel.  Set w234_dtype=jnp.bfloat16 to also
    halve the resident epilogue weights (useful on v7x's 64 MiB VMEM).
    """
    kp = {
        "w1": params["w1"].T.astype(w1_dtype),            # (K, 4h)
        "b1": params["b1"].reshape(1, -1).astype(jnp.float32),
        "w2": params["w2"].T.astype(w234_dtype),          # (4h, 2h)
        "b2": params["b2"].reshape(1, -1).astype(jnp.float32),
        "w3": params["w3"].T.astype(w234_dtype),          # (2h, h)
        "b3": params["b3"].reshape(1, -1).astype(jnp.float32),
    }
    w4t = params["w4"].T.astype(w234_dtype)               # (h, n_out)
    b4 = params["b4"].reshape(1, -1).astype(jnp.float32)
    n_out = w4t.shape[1]
    npad = _round_up(max(n_out, lane_pad), lane_pad)      # lane-dense output slab
    kp["w4"] = jnp.pad(w4t, ((0, 0), (0, npad - n_out)))
    kp["b4"] = jnp.pad(b4, ((0, 0), (0, npad - n_out)))
    kp["n_out"] = n_out
    return kp


# ----------------------------------------------------------------------------
# VMEM sizing
# ----------------------------------------------------------------------------
def _physical_vmem_bytes():
    """Per-core VMEM capacity (128 MiB v5e/v6e, 64 MiB v7x); safe fallback."""
    try:
        info = pltpu.get_tpu_info()
        v = getattr(info, "vmem_capacity_bytes", None)
        if v:
            return int(v)
    except Exception:
        pass
    return 64 << 20     # conservative: v7x per-TC


def _vmem_need_bytes(tb, tk, h4, h2, h1, npad, x_item, w1_item, w234_item):
    # Streamed x / W1 tiles are double-buffered by the BlockSpec pipeline.
    stream = 2 * (tb * tk * x_item + tk * h4 * w1_item)
    # Constant-index_map ("resident") blocks are ALSO double-buffered by
    # default -> count the 2x so we never overcommit VMEM on v7x.
    resident = 2 * (w234_item * (h4 * h2 + h2 * h1 + h1 * npad)
                    + 4 * (h4 + h2 + h1 + npad))
    acc = 4 * tb * h4                                  # layer-1 f32 accumulator
    out = 2 * 4 * tb * npad                            # double-buffered output block
    return stream + resident + acc + out


# ----------------------------------------------------------------------------
# Forward wrapper
# ----------------------------------------------------------------------------
def discriminator_forward(x, kp, *, tb=None, tk=None):
    """x: (B, inp_dim).  kp: output of prepare_kernel_params()."""
    B, K = x.shape
    Kw, H4 = kp["w1"].shape
    assert K == Kw, (K, Kw)
    H2 = kp["w2"].shape[1]
    H1 = kp["w3"].shape[1]
    NP = kp["w4"].shape[1]
    n_out = kp["n_out"]
    w1 = kp["w1"]

    # Cast x ONCE to W1's dtype (bf16 default): halves x HBM traffic + VMEM
    # tile and removes the per-K-step in-kernel convert.
    x = x.astype(w1.dtype)
    x_item = x.dtype.itemsize
    w1_item = w1.dtype.itemsize
    w234_item = kp["w2"].dtype.itemsize

    # Generation-aware VMEM budget (~96 MiB on v5e/v6e, ~48 MiB on v7x).
    vmem_budget = (_physical_vmem_bytes() * 3) // 4

    # --- batch tile ----------------------------------------------------------
    # Large tb => each streamed W1 tile is reused across more batch rows
    # (W1 is re-streamed once per batch block).  16-aligned for bf16 sublane
    # packing; 128-aligned for large batches to fill the MXU M dimension.
    align = 16 if x.dtype == jnp.bfloat16 else 8
    if tb is None:
        tb = min(_round_up(B, align), 512)
        if B >= 256:
            tb = _round_up(tb, 128)
    Bp = _round_up(B, tb)
    if Bp != B:
        x = jnp.pad(x, ((0, Bp - B), (0, 0)))

    # --- K tile: grow the double-buffered W1 stream to fill the VMEM budget --
    if tk is None:
        fixed = _vmem_need_bytes(tb, 0, H4, H2, H1, NP, x_item, w1_item, w234_item)
        stream_budget = max((vmem_budget - fixed) * 2 // 3, 4 << 20)  # 1/3 headroom
        per_k = 2 * (tb * x_item + H4 * w1_item)
        tk = (stream_budget // per_k) // 128 * 128
        tk = max(128, min(_round_up(K, 128), tk))
    Kp = _round_up(K, tk)
    if Kp != K:
        x = jnp.pad(x, ((0, 0), (0, Kp - K)))
        w1 = jnp.pad(w1, ((0, Kp - K), (0, 0)))     # zero rows -> zero contribution

    grid = (Bp // tb, Kp // tk)

    out = pl.pallas_call(
        disc_kernel,
        out_shape=jax.ShapeDtypeStruct((Bp, NP), jnp.float32),
        grid_spec=pltpu.PrefetchScalarGridSpec(
            num_scalar_prefetch=0,
            grid=grid,
            in_specs=[
                pl.BlockSpec((tb, tk), lambda i, k: (i, k)),    # x: streamed
                pl.BlockSpec((tk, H4), lambda i, k: (k, 0)),    # W1: streamed K tiles
                pl.BlockSpec((1, H4), lambda i, k: (0, 0)),     # b1: resident
                pl.BlockSpec((H4, H2), lambda i, k: (0, 0)),    # w2: resident
                pl.BlockSpec((1, H2), lambda i, k: (0, 0)),     # b2: resident
                pl.BlockSpec((H2, H1), lambda i, k: (0, 0)),    # w3: resident
                pl.BlockSpec((1, H1), lambda i, k: (0, 0)),     # b3: resident
                pl.BlockSpec((H1, NP), lambda i, k: (0, 0)),    # w4 (lane-padded)
                pl.BlockSpec((1, NP), lambda i, k: (0, 0)),     # b4 (lane-padded)
            ],
            out_specs=pl.BlockSpec((tb, NP), lambda i, k: (i, 0)),
            scratch_shapes=[pltpu.VMEM((tb, H4), jnp.float32)],
        ),
        compiler_params=pltpu.CompilerParams(
            dimension_semantics=("parallel", "arbitrary"),
            vmem_limit_bytes=int(vmem_budget),
        ),
    )(x, w1, kp["b1"], kp["w2"], kp["b2"], kp["w3"], kp["b3"], kp["w4"], kp["b4"])

    return out[:B, :n_out]


# ----------------------------------------------------------------------------
# Params / references
# ----------------------------------------------------------------------------
def init_params(key, inp_dim, hidden_dim):
    """PyTorch-default-style init: U(-1/sqrt(fan_in), 1/sqrt(fan_in)), (out, in) layout."""
    dims = [(inp_dim, hidden_dim * 4),
            (hidden_dim * 4, hidden_dim * 2),
            (hidden_dim * 2, hidden_dim),
            (hidden_dim, 1)]
    params = {}
    for i, (fan_in, fan_out) in enumerate(dims, start=1):
        key, kw, kb = jax.random.split(key, 3)
        bound = 1.0 / (fan_in ** 0.5)
        params[f"w{i}"] = jax.random.uniform(
            kw, (fan_out, fan_in), jnp.float32, -bound, bound)
        params[f"b{i}"] = jax.random.uniform(
            kb, (fan_out,), jnp.float32, -bound, bound)
    return params


def reference_forward_f32(x, params):
    """Pure-JAX f32 reference matching the PyTorch forward exactly."""
    h = x
    for i in (1, 2, 3):
        h = h @ params[f"w{i}"].T + params[f"b{i}"]
        h = jnp.where(h > 0, h, 0.2 * h)
    return h @ params["w4"].T + params["b4"]


def reference_forward_matched(x, params, *, w1_dtype, w234_dtype=jnp.float32):
    """Reference with the same dtype choices as the kernel (f32 accumulation)."""
    h = jnp.dot(x.astype(w1_dtype), params["w1"].T.astype(w1_dtype),
                preferred_element_type=jnp.float32) + params["b1"]
    h = jnp.where(h > 0, h, 0.2 * h)
    for i in (2, 3):
        h = jnp.dot(h.astype(w234_dtype), params[f"w{i}"].T.astype(w234_dtype),
                    preferred_element_type=jnp.float32) + params[f"b{i}"]
        h = jnp.where(h > 0, h, 0.2 * h)
    return jnp.dot(h.astype(w234_dtype), params["w4"].T.astype(w234_dtype),
                   preferred_element_type=jnp.float32) + params["b4"]


if __name__ == "__main__":
    # Small shapes consistent with the module (flattened-image MLP discriminator).
    B = 8
    INP_DIM = 512      # stands in for 262144 (262144 % 2048 == 0, so it K-tiles unchanged)
    HIDDEN = 32        # stands in for 256

    key = jax.random.PRNGKey(0)
    key, kx = jax.random.split(key)
    x = jax.random.normal(kx, (B, INP_DIM), jnp.float32)
    params = init_params(key, INP_DIM, HIDDEN)

    # One-time layout conversion; bf16 W1 (the default, bandwidth-bound path).
    kparams = prepare_kernel_params(params)

    # tk=128 -> 4 K-steps so the zero/accumulate/epilogue phases are exercised.
    out = discriminator_forward(x, kparams, tk=128)
    out = jax.block_until_ready(out)
    assert out.shape == (B, 1), out.shape

    # Tight check against a dtype-matched reference (bf16 layer-1, f32 accum).
    ref_matched = reference_forward_matched(x, params, w1_dtype=jnp.bfloat16)
    assert jnp.allclose(out, ref_matched, atol=2e-3, rtol=2e-3), "mismatch vs matched ref"

    # Loose semantic sanity check against the exact f32 PyTorch-style forward.
    ref_f32 = reference_forward_f32(x, params)
    assert jnp.allclose(out, ref_f32, atol=1e-1, rtol=1e-1), "mismatch vs f32 ref"

    print("KERNEL_OK")
</pallas_src>

<mosaic_0001>
module attributes {stable_mosaic.version = 11 : i64} {
  func.func @disc_kernel(%arg0: i32, %arg1: i32, %arg2: memref<16x128xbf16, #tpu.memory_space<vmem>>, %arg3: memref<128x128xbf16, #tpu.memory_space<vmem>>, %arg4: memref<1x128xf32, #tpu.memory_space<vmem>>, %arg5: memref<128x64xf32, #tpu.memory_space<vmem>>, %arg6: memref<1x64xf32, #tpu.memory_space<vmem>>, %arg7: memref<64x32xf32, #tpu.memory_space<vmem>>, %arg8: memref<1x32xf32, #tpu.memory_space<vmem>>, %arg9: memref<32x128xf32, #tpu.memory_space<vmem>>, %arg10: memref<1x128xf32, #tpu.memory_space<vmem>>, %arg11: memref<16x128xf32, #tpu.memory_space<vmem>>, %arg12: memref<16x128xf32, #tpu.memory_space<vmem>>) attributes {dimension_semantics = [#tpu.dimension_semantics<parallel>, #tpu.dimension_semantics<arbitrary>], iteration_bounds = array<i64: 1, 4>, scalar_prefetch = 0 : i64, scratch_operands = 1 : i64, tpu.core_type = #tpu.core_type<tc>, window_params = [{transform_indices = @transform_0, window_bounds = array<i64: 16, 128>}, {transform_indices = @transform_1, window_bounds = array<i64: 128, 128>}, {pipeline_mode = #tpu.pipeline_mode<synchronous>, transform_indices = @transform_2, window_bounds = array<i64: 1, 128>}, {pipeline_mode = #tpu.pipeline_mode<synchronous>, transform_indices = @transform_3, window_bounds = array<i64: 128, 64>}, {pipeline_mode = #tpu.pipeline_mode<synchronous>, transform_indices = @transform_4, window_bounds = array<i64: 1, 64>}, {pipeline_mode = #tpu.pipeline_mode<synchronous>, transform_indices = @transform_5, window_bounds = array<i64: 64, 32>}, {pipeline_mode = #tpu.pipeline_mode<synchronous>, transform_indices = @transform_6, window_bounds = array<i64: 1, 32>}, {pipeline_mode = #tpu.pipeline_mode<synchronous>, transform_indices = @transform_7, window_bounds = array<i64: 32, 128>}, {pipeline_mode = #tpu.pipeline_mode<synchronous>, transform_indices = @transform_8, window_bounds = array<i64: 1, 128>}, {transform_indices = @transform_9, window_bounds = array<i64: 16, 128>}]} {
    %c0_i32 = arith.constant 0 : i32
    %0 = arith.cmpi eq, %arg1, %c0_i32 : i32
    %1 = arith.extui %0 : i1 to i32
    %c0_i32_0 = arith.constant 0 : i32
    %2 = arith.cmpi ne, %1, %c0_i32_0 : i32
    scf.if %2 {
      %cst_9 = arith.constant 0.000000e+00 : f32
      %12 = vector.broadcast %cst_9 : f32 to vector<16x128xf32>
      %c0_10 = arith.constant 0 : index
      %c0_11 = arith.constant 0 : index
      %13 = vector.load %arg12[%c0_10, %c0_11] : memref<16x128xf32, #tpu.memory_space<vmem>>, vector<16x128xf32>
      tpu.vector_store %arg12[%c0_10, %c0_11], %12 {strides = array<i32>} : memref<16x128xf32, #tpu.memory_space<vmem>>, vector<16x128xf32>,
    } else {
    }
    %c0 = arith.constant 0 : index
    %c0_1 = arith.constant 0 : index
    %3 = vector.load %arg12[%c0, %c0_1] : memref<16x128xf32, #tpu.memory_space<vmem>>, vector<16x128xf32>
    %c0_2 = arith.constant 0 : index
    %c0_3 = arith.constant 0 : index
    %4 = vector.load %arg2[%c0_2, %c0_3] : memref<16x128xbf16, #tpu.memory_space<vmem>>, vector<16x128xbf16>
    %c0_4 = arith.constant 0 : index
    %c0_5 = arith.constant 0 : index
    %5 = vector.load %arg3[%c0_4, %c0_5] : memref<128x128xbf16, #tpu.memory_space<vmem>>, vector<128x128xbf16>
    %cst = arith.constant dense<0.000000e+00> : vector<16x128xf32>
    %6 = tpu.matmul %4, %5, %cst {dimension_numbers = #tpu.dot_dimension_numbers<[1], [0], [0], [1], [0, 0, 1, 1], [], []>} : vector<16x128xbf16>, vector<128x128xbf16>, vector<16x128xf32> -> vector<16x128xf32>
    %7 = arith.addf %3, %6 : vector<16x128xf32>
    %c0_6 = arith.constant 0 : index
    %c0_7 = arith.constant 0 : index
    %8 = vector.load %arg12[%c0_6, %c0_7] : memref<16x128xf32, #tpu.memory_space<vmem>>, vector<16x128xf32>
    tpu.vector_store %arg12[%c0_6, %c0_7], %7 {strides = array<i32>} : memref<16x128xf32, #tpu.memory_space<vmem>>, vector<16x128xf32>,
    %c3_i32 = arith.constant 3 : i32
    %9 = arith.cmpi eq, %arg1, %c3_i32 : i32
    %10 = arith.extui %9 : i1 to i32
    %c0_i32_8 = arith.constant 0 : i32
    %11 = arith.cmpi ne, %10, %c0_i32_8 : i32
    scf.if %11 {
      %c0_9 = arith.constant 0 : index
      %c0_10 = arith.constant 0 : index
      %12 = vector.load %arg12[%c0_9, %c0_10] : memref<16x128xf32, #tpu.memory_space<vmem>>, vector<16x128xf32>
      %c0_11 = arith.constant 0 : index
      %c0_12 = arith.constant 0 : index
      %13 = vector.load %arg4[%c0_11, %c0_12] : memref<1x128xf32, #tpu.memory_space<vmem>>, vector<1x128xf32>
      %14 = vector.broadcast %13 : vector<1x128xf32> to vector<16x128xf32>
      %15 = arith.addf %12, %14 : vector<16x128xf32>
      %cst_13 = arith.constant 0.000000e+00 : f32
      %16 = vector.broadcast %cst_13 : f32 to vector<16x128xf32>
      %17 = arith.cmpf ogt, %15, %16 : vector<16x128xf32>
      %cst_14 = arith.constant 2.000000e-01 : f32
      %18 = vector.broadcast %cst_14 : f32 to vector<16x128xf32>
      %19 = arith.mulf %18, %15 : vector<16x128xf32>
      %20 = arith.select %17, %15, %19 : vector<16x128xi1>, vector<16x128xf32>
      %c0_15 = arith.constant 0 : index
      %c0_16 = arith.constant 0 : index
      %21 = vector.load %arg5[%c0_15, %c0_16] : memref<128x64xf32, #tpu.memory_space<vmem>>, vector<128x64xf32>
      %cst_17 = arith.constant dense<0.000000e+00> : vector<16x64xf32>
      %22 = tpu.matmul %20, %21, %cst_17 {dimension_numbers = #tpu.dot_dimension_numbers<[1], [0], [0], [1], [0, 0, 1, 1], [], []>} : vector<16x128xf32>, vector<128x64xf32>, vector<16x64xf32> -> vector<16x64xf32>
      %c0_18 = arith.constant 0 : index
      %c0_19 = arith.constant 0 : index
      %23 = vector.load %arg6[%c0_18, %c0_19] : memref<1x64xf32, #tpu.memory_space<vmem>>, vector<1x64xf32>
      %24 = vector.broadcast %23 : vector<1x64xf32> to vector<16x64xf32>
      %25 = arith.addf %22, %24 : vector<16x64xf32>
      %cst_20 = arith.constant 0.000000e+00 : f32
      %26 = vector.broadcast %cst_20 : f32 to vector<16x64xf32>
      %27 = arith.cmpf ogt, %25, %26 : vector<16x64xf32>
      %cst_21 = arith.constant 2.000000e-01 : f32
      %28 = vector.broadcast %cst_21 : f32 to vector<16x64xf32>
      %29 = arith.mulf %28, %25 : vector<16x64xf32>
      %30 = arith.select %27, %25, %29 : vector<16x64xi1>, vector<16x64xf32>
      %c0_22 = arith.constant 0 : index
      %c0_23 = arith.constant 0 : index
      %31 = vector.load %arg7[%c0_22, %c0_23] : memref<64x32xf32, #tpu.memory_space<vmem>>, vector<64x32xf32>
      %cst_24 = arith.constant dense<0.000000e+00> : vector<16x32xf32>
      %32 = tpu.matmul %30, %31, %cst_24 {dimension_numbers = #tpu.dot_dimension_numbers<[1], [0], [0], [1], [0, 0, 1, 1], [], []>} : vector<16x64xf32>, vector<64x32xf32>, vector<16x32xf32> -> vector<16x32xf32>
      %c0_25 = arith.constant 0 : index
      %c0_26 = arith.constant 0 : index
      %33 = vector.load %arg8[%c0_25, %c0_26] : memref<1x32xf32, #tpu.memory_space<vmem>>, vector<1x32xf32>
      %34 = vector.broadcast %33 : vector<1x32xf32> to vector<16x32xf32>
      %35 = arith.addf %32, %34 : vector<16x32xf32>
      %cst_27 = arith.constant 0.000000e+00 : f32
      %36 = vector.broadcast %cst_27 : f32 to vector<16x32xf32>
      %37 = arith.cmpf ogt, %35, %36 : vector<16x32xf32>
      %cst_28 = arith.constant 2.000000e-01 : f32
      %38 = vector.broadcast %cst_28 : f32 to vector<16x32xf32>
      %39 = arith.mulf %38, %35 : vector<16x32xf32>
      %40 = arith.select %37, %35, %39 : vector<16x32xi1>, vector<16x32xf32>
      %c0_29 = arith.constant 0 : index
      %c0_30 = arith.constant 0 : index
      %41 = vector.load %arg9[%c0_29, %c0_30] : memref<32x128xf32, #tpu.memory_space<vmem>>, vector<32x128xf32>
      %cst_31 = arith.constant dense<0.000000e+00> : vector<16x128xf32>
      %42 = tpu.matmul %40, %41, %cst_31 {dimension_numbers = #tpu.dot_dimension_numbers<[1], [0], [0], [1], [0, 0, 1, 1], [], []>} : vector<16x32xf32>, vector<32x128xf32>, vector<16x128xf32> -> vector<16x128xf32>
      %c0_32 = arith.constant 0 : index
      %c0_33 = arith.constant 0 : index
      %43 = vector.load %arg10[%c0_32, %c0_33] : memref<1x128xf32, #tpu.memory_space<vmem>>, vector<1x128xf32>
      %44 = vector.broadcast %43 : vector<1x128xf32> to vector<16x128xf32>
      %45 = arith.addf %42, %44 : vector<16x128xf32>
      %c0_34 = arith.constant 0 : index
      %c0_35 = arith.constant 0 : index
      %46 = vector.load %arg11[%c0_34, %c0_35] : memref<16x128xf32, #tpu.memory_space<vmem>>, vector<16x128xf32>
      tpu.vector_store %arg11[%c0_34, %c0_35], %45 {strides = array<i32>} : memref<16x128xf32, #tpu.memory_space<vmem>>, vector<16x128xf32>,
    } else {
    }
    return
  }
  func.func @transform_0(%arg0: i32, %arg1: i32) -> (i32, i32) {
    %c0_i32 = arith.constant 0 : i32
    return %arg0, %arg1 : i32, i32
  }
  func.func @transform_1(%arg0: i32, %arg1: i32) -> (i32, i32) {
    %c0_i32 = arith.constant 0 : i32
    %c0_i32_0 = arith.constant 0 : i32
    return %arg1, %c0_i32 : i32, i32
  }
  func.func @transform_2(%arg0: i32, %arg1: i32) -> (i32, i32) {
    %c0_i32 = arith.constant 0 : i32
    %c0_i32_0 = arith.constant 0 : i32
    %c0_i32_1 = arith.constant 0 : i32
    return %c0_i32, %c0_i32_0 : i32, i32
  }
  func.func @transform_3(%arg0: i32, %arg1: i32) -> (i32, i32) {
    %c0_i32 = arith.constant 0 : i32
    %c0_i32_0 = arith.constant 0 : i32
    %c0_i32_1 = arith.constant 0 : i32
    return %c0_i32, %c0_i32_0 : i32, i32
  }
  func.func @transform_4(%arg0: i32, %arg1: i32) -> (i32, i32) {
    %c0_i32 = arith.constant 0 : i32
    %c0_i32_0 = arith.constant 0 : i32
    %c0_i32_1 = arith.constant 0 : i32
    return %c0_i32, %c0_i32_0 : i32, i32
  }
  func.func @transform_5(%arg0: i32, %arg1: i32) -> (i32, i32) {
    %c0_i32 = arith.constant 0 : i32
    %c0_i32_0 = arith.constant 0 : i32
    %c0_i32_1 = arith.constant 0 : i32
    return %c0_i32, %c0_i32_0 : i32, i32
  }
  func.func @transform_6(%arg0: i32, %arg1: i32) -> (i32, i32) {
    %c0_i32 = arith.constant 0 : i32
    %c0_i32_0 = arith.constant 0 : i32
    %c0_i32_1 = arith.constant 0 : i32
    return %c0_i32, %c0_i32_0 : i32, i32
  }
  func.func @transform_7(%arg0: i32, %arg1: i32) -> (i32, i32) {
    %c0_i32 = arith.constant 0 : i32
    %c0_i32_0 = arith.constant 0 : i32
    %c0_i32_1 = arith.constant 0 : i32
    return %c0_i32, %c0_i32_0 : i32, i32
  }
  func.func @transform_8(%arg0: i32, %arg1: i32) -> (i32, i32) {
    %c0_i32 = arith.constant 0 : i32
    %c0_i32_0 = arith.constant 0 : i32
    %c0_i32_1 = arith.constant 0 : i32
    return %c0_i32, %c0_i32_0 : i32, i32
  }
  func.func @transform_9(%arg0: i32, %arg1: i32) -> (i32, i32) {
    %c0_i32 = arith.constant 0 : i32
    %c0_i32_0 = arith.constant 0 : i32
    return %arg0, %c0_i32 : i32, i32
  }
}

</mosaic_0001>

<llo_original>
// kernel: tpu_custom_call.1
$region0: #{tpu_custom_call.1}
  #allocation0 [shape = 'u32[]', space=smem, size = 0x4, offset = 0x4, fixed_abs, tag = 'smem constant byte address 0x4 - core index']
  #allocation1 [shape = 'u32[144,128]{1,0:T(1,128)}', space=vmem, size = 0x12000, scoped, tag = 'internal scratch']
  #allocation2 [shape = 'f32[16,128]{1,0:T(8,128)}', space=vmem, size = 0x2000, scoped, tag = 'scratch operand']
  %s0 = inlined_call_operand.vmem [shape: bf16[16,512], index: 0, kind: input, shape index: {}]
  %s1 = inlined_call_operand.vmem [shape: bf16[512,128], index: 1, kind: input, shape index: {}]
  %s2 = inlined_call_operand.vmem [shape: f32[1,128], index: 2, kind: input, shape index: {}]
  %s3 = inlined_call_operand.vmem [shape: f32[128,64], index: 3, kind: input, shape index: {}]
  %s4 = inlined_call_operand.vmem [shape: f32[1,64], index: 4, kind: input, shape index: {}]
  %s5 = inlined_call_operand.vmem [shape: f32[64,32], index: 5, kind: input, shape index: {}]
  %s6 = inlined_call_operand.vmem [shape: f32[1,32], index: 6, kind: input, shape index: {}]
  %s7 = inlined_call_operand.hbm [shape: f32[32,128], index: 7, kind: input, shape index: {}]
  %s8 = inlined_call_operand.vmem [shape: f32[1,128], index: 8, kind: input, shape index: {}]
  %s9 = inlined_call_operand.hbm [shape: f32[16,128], index: 9, kind: output, shape index: {}]
  %s10 = sld [smem:[#allocation0]]
  $region122: #{tpu_custom_call.1} parent=0
    _
  %s12 = ssub.s32 1, %s10
  %s13 = scalar_select 0, %s12, %s10
  $region1: #{tpu_custom_call.1} parent=0
    #allocation3 [shape = 'u8[8192]{0}', space=vmem, size = 0x2000, scoped, tag = 'input window, operand 0']
    #allocation4 [shape = 'u8[16384]{0}', space=vmem, size = 0x4000, scoped, tag = 'input window, operand 7, single buffered']
    #allocation5 [shape = 's32[2]{0}', space=sflag, size = 0x8, scoped, tag = 'scoped memory for tpu_custom_call.1']
    #allocation6 [shape = 's32[2]{0}', space=sflag, size = 0x8, scoped, tag = 'scoped memory for tpu_custom_call.1']
    #allocation7 [shape = 'u8[8192]{0}', space=vmem, size = 0x2000, scoped, tag = 'output window, operand 0, single buffered']
    %14 = vsyncpa [#allocation5], 0
    %15 = vsyncpa [#allocation6], 0
    loop: start=0, step=1, limit=6
    $region2: #{tpu_custom_call.1} parent=1 // loop_pre_header
      _
    $region3: #{tpu_custom_call.1} parent=1 // loop_header
      %s17 = sphi 0, %s21
      %p18 = scmp.ge.s32.totalorder %s17, 6
      %s24 = sphi 0, %s36
      %s25 = sphi 0, %s32
      %s26 = sphi 0, %s24
      %s27 = sphi 0, %s25
      %s28 = sphi 0, %s26
      %s29 = sphi 0, %s27
      %s41 = sphi 0, %s43
      %s44 = sphi 0, %s41
      %s45 = sphi 0, %s44
      %s61 = sphi 0, %s45
      %s67 = sphi 0, %s69
      %s70 = sphi 0, %s67
      %s71 = sphi 0, %s70
      %s87 = sphi 0, %s71
      %s91 = sphi 0, %s91
      %s93 = sphi 0, %s91
      %s94 = sphi 0, %s93
      %s108 = sphi 0, %s94
      %s112 = sphi 0, %s112
      %s114 = sphi 0, %s112
      %s115 = sphi 0, %s114
      %s129 = sphi 0, %s115
      %s133 = sphi 0, %s133
      %s135 = sphi 0, %s133
      %s136 = sphi 0, %s135
      %s150 = sphi 0, %s136
      %s154 = sphi 0, %s154
      %s156 = sphi 0, %s154
      %s157 = sphi 0, %s156
      %s171 = sphi 0, %s157
      %s175 = sphi 0, %s175
      %s177 = sphi 0, %s175
      %s178 = sphi 0, %s177
      %s192 = sphi 0, %s178
      %s196 = sphi 0, %s196
      %s198 = sphi 0, %s196
      %s199 = sphi 0, %s198
      %s213 = sphi 0, %s199
      %s217 = sphi 0, %s217
      %s219 = sphi 0, %s217
      %s220 = sphi 0, %s219
      %s234 = sphi 0, %s220
      %s240 = sphi 0, %s242
      %s243 = sphi 0, %s240
      %s244 = sphi 0, %s243
      %s260 = sphi 0, %s244
    $region4: #{tpu_custom_call.1} parent=1 // loop_header_branch
      %20 = sbr.rel (%p18) target = $region8
    $region5: #{tpu_custom_call.1} parent=1 // loop_body
      %s22 = ssub.s32 %s17, 1
      %s23 = ssub.s32 %s17, 2
      %s30 = sadd.s32 1, %s25
      %p31 = scmp.ge.s32.totalorder %s30, 4
      %s32 = scalar_select %p31, 0, %s30
      %s33 = sadd.s32 1, %s24
      %s34 = scalar_select %p31, %s33, %s24
      %p35 = scmp.ge.s32.totalorder %s34, 1
      %s36 = scalar_select %p35, 0, %s34
      %s37 = ssub.s32 %s24, %s36
      %s38 = ssub.s32 %s25, %s32
      %s39 = sor.u32 %s37, %s38
      %p40 = scmp.eq.s32.totalorder %s39, 0
      %s42 = sadd.s32 %s41, 1
      %s43 = scalar_select %p40, %s41, %s42
      %p46 = pneg %p40
      %p47 = scmp.eq.s32.totalorder %s17, 3
      %p48 = por %p46, %p47
      %p49 = scmp.ne.s32.totalorder %s41, %s44
      %p50 = scmp.eq.s32.totalorder %s17, 0
      %p51 = por %p49, %p50
      %p52 = scmp.ne.s32.totalorder %s41, %s44
      %p53 = scmp.eq.s32.totalorder %s22, 3
      %p54 = por %p52, %p53
      %p55 = scmp.ne.s32.totalorder %s44, %s45
      %p56 = scmp.eq.s32.totalorder %s22, 0
      %p57 = por %p55, %p56
      %p58 = scmp.ne.s32.totalorder %s44, %s45
      %p59 = scmp.eq.s32.totalorder %s23, 3
      %p60 = por %p58, %p59
      %p62 = scmp.ne.s32.totalorder %s45, %s61
      %p63 = scmp.eq.s32.totalorder %s23, 0
      %p64 = por %p62, %p63
      %s65 = ssub.s32 %s25, %s32
      %p66 = scmp.eq.s32.totalorder %s65, 0
      %s68 = sadd.s32 %s67, 1
      %s69 = scalar_select %p66, %s67, %s68
      %p72 = pneg %p66
      %p73 = scmp.eq.s32.totalorder %s17, 3
      %p74 = por %p72, %p73
      %p75 = scmp.ne.s32.totalorder %s67, %s70
      %p76 = scmp.eq.s32.totalorder %s17, 0
      %p77 = por %p75, %p76
      %p78 = scmp.ne.s32.totalorder %s67, %s70
      %p79 = scmp.eq.s32.totalorder %s22, 3
      %p80 = por %p78, %p79
      %p81 = scmp.ne.s32.totalorder %s70, %s71
      %p82 = scmp.eq.s32.totalorder %s22, 0
      %p83 = por %p81, %p82
      %p84 = scmp.ne.s32.totalorder %s70, %s71
      %p85 = scmp.eq.s32.totalorder %s23, 3
      %p86 = por %p84, %p85
      %p88 = scmp.ne.s32.totalorder %s71, %s87
      %p89 = scmp.eq.s32.totalorder %s23, 0
      %p90 = por %p88, %p89
      %s92 = sadd.s32 %s91, 1
      %p95 = scmp.eq.s32.totalorder %s17, 3
      %p96 = scmp.ne.s32.totalorder %s91, %s93
      %p97 = scmp.eq.s32.totalorder %s17, 0
      %p98 = por %p96, %p97
      %p99 = scmp.ne.s32.totalorder %s91, %s93
      %p100 = scmp.eq.s32.totalorder %s22, 3
      %p101 = por %p99, %p100
      %p102 = scmp.ne.s32.totalorder %s93, %s94
      %p103 = scmp.eq.s32.totalorder %s22, 0
      %p104 = por %p102, %p103
      %p105 = scmp.ne.s32.totalorder %s93, %s94
      %p106 = scmp.eq.s32.totalorder %s23, 3
      %p107 = por %p105, %p106
      %p109 = scmp.ne.s32.totalorder %s94, %s108
      %p110 = scmp.eq.s32.totalorder %s23, 0
      %p111 = por %p109, %p110
      %s113 = sadd.s32 %s112, 1
      %p116 = scmp.eq.s32.totalorder %s17, 3
      %p117 = scmp.ne.s32.totalorder %s112, %s114
      %p118 = scmp.eq.s32.totalorder %s17, 0
      %p119 = por %p117, %p118
      %p120 = scmp.ne.s32.totalorder %s112, %s114
      %p121 = scmp.eq.s32.totalorder %s22, 3
      %p122 = por %p120, %p121
      %p123 = scmp.ne.s32.totalorder %s114, %s115
      %p124 = scmp.eq.s32.totalorder %s22, 0
      %p125 = por %p123, %p124
      %p126 = scmp.ne.s32.totalorder %s114, %s115
      %p127 = scmp.eq.s32.totalorder %s23, 3
      %p128 = por %p126, %p127
      %p130 = scmp.ne.s32.totalorder %s115, %s129
      %p131 = scmp.eq.s32.totalorder %s23, 0
      %p132 = por %p130, %p131
      %s134 = sadd.s32 %s133, 1
      %p137 = scmp.eq.s32.totalorder %s17, 3
      %p138 = scmp.ne.s32.totalorder %s133, %s135
      %p139 = scmp.eq.s32.totalorder %s17, 0
      %p140 = por %p138, %p139
      %p141 = scmp.ne.s32.totalorder %s133, %s135
      %p142 = scmp.eq.s32.totalorder %s22, 3
      %p143 = por %p141, %p142
      %p144 = scmp.ne.s32.totalorder %s135, %s136
      %p145 = scmp.eq.s32.totalorder %s22, 0
      %p146 = por %p144, %p145
      %p147 = scmp.ne.s32.totalorder %s135, %s136
      %p148 = scmp.eq.s32.totalorder %s23, 3
      %p149 = por %p147, %p148
      %p151 = scmp.ne.s32.totalorder %s136, %s150
      %p152 = scmp.eq.s32.totalorder %s23, 0
      %p153 = por %p151, %p152
      %s155 = sadd.s32 %s154, 1
      %p158 = scmp.eq.s32.totalorder %s17, 3
      %p159 = scmp.ne.s32.totalorder %s154, %s156
      %p160 = scmp.eq.s32.totalorder %s17, 0
      %p161 = por %p159, %p160
      %p162 = scmp.ne.s32.totalorder %s154, %s156
      %p163 = scmp.eq.s32.totalorder %s22, 3
      %p164 = por %p162, %p163
      %p165 = scmp.ne.s32.totalorder %s156, %s157
      %p166 = scmp.eq.s32.totalorder %s22, 0
      %p167 = por %p165, %p166
      %p168 = scmp.ne.s32.totalorder %s156, %s157
      %p169 = scmp.eq.s32.totalorder %s23, 3
      %p170 = por %p168, %p169
      %p172 = scmp.ne.s32.totalorder %s157, %s171
      %p173 = scmp.eq.s32.totalorder %s23, 0
      %p174 = por %p172, %p173
      %s176 = sadd.s32 %s175, 1
      %p179 = scmp.eq.s32.totalorder %s17, 3
      %p180 = scmp.ne.s32.totalorder %s175, %s177
      %p181 = scmp.eq.s32.totalorder %s17, 0
      %p182 = por %p180, %p181
      %p183 = scmp.ne.s32.totalorder %s175, %s177
      %p184 = scmp.eq.s32.totalorder %s22, 3
      %p185 = por %p183, %p184
      %p186 = scmp.ne.s32.totalorder %s177, %s178
      %p187 = scmp.eq.s32.totalorder %s22, 0
      %p188 = por %p186, %p187
      %p189 = scmp.ne.s32.totalorder %s177, %s178
      %p190 = scmp.eq.s32.totalorder %s23, 3
      %p191 = por %p189, %p190
      %p193 = scmp.ne.s32.totalorder %s178, %s192
      %p194 = scmp.eq.s32.totalorder %s23, 0
      %p195 = por %p193, %p194
      %s197 = sadd.s32 %s196, 1
      %p200 = scmp.eq.s32.totalorder %s17, 3
      %p201 = scmp.ne.s32.totalorder %s196, %s198
      %p202 = scmp.eq.s32.totalorder %s17, 0
      %p203 = por %p201, %p202
      %p204 = scmp.ne.s32.totalorder %s196, %s198
      %p205 = scmp.eq.s32.totalorder %s22, 3
      %p206 = por %p204, %p205
      %p207 = scmp.ne.s32.totalorder %s198, %s199
      %p208 = scmp.eq.s32.totalorder %s22, 0
      %p209 = por %p207, %p208
      %p210 = scmp.ne.s32.totalorder %s198, %s199
      %p211 = scmp.eq.s32.totalorder %s23, 3
      %p212 = por %p210, %p211
      %p214 = scmp.ne.s32.totalorder %s199, %s213
      %p215 = scmp.eq.s32.totalorder %s23, 0
      %p216 = por %p214, %p215
      %s218 = sadd.s32 %s217, 1
      %p221 = scmp.eq.s32.totalorder %s17, 3
      %p222 = scmp.ne.s32.totalorder %s217, %s219
      %p223 = scmp.eq.s32.totalorder %s17, 0
      %p224 = por %p222, %p223
      %p225 = scmp.ne.s32.totalorder %s217, %s219
      %p226 = scmp.eq.s32.totalorder %s22, 3
      %p227 = por %p225, %p226
      %p228 = scmp.ne.s32.totalorder %s219, %s220
      %p229 = scmp.eq.s32.totalorder %s22, 0
      %p230 = por %p228, %p229
      %p231 = scmp.ne.s32.totalorder %s219, %s220
      %p232 = scmp.eq.s32.totalorder %s23, 3
      %p233 = por %p231, %p232
      %p235 = scmp.ne.s32.totalorder %s220, %s234
      %p236 = scmp.eq.s32.totalorder %s23, 0
      %p237 = por %p235, %p236
      %s238 = ssub.s32 %s24, %s36
      %p239 = scmp.eq.s32.totalorder %s238, 0
      %s241 = sadd.s32 %s240, 1
      %s242 = scalar_select %p239, %s240, %s241
      %p245 = pneg %p239
      %p246 = scmp.eq.s32.totalorder %s17, 3
      %p247 = por %p245, %p246
      %p248 = scmp.ne.s32.totalorder %s240, %s243
      %p249 = scmp.eq.s32.totalorder %s17, 0
      %p250 = por %p248, %p249
      %p251 = scmp.ne.s32.totalorder %s240, %s243
      %p252 = scmp.eq.s32.totalorder %s22, 3
      %p253 = por %p251, %p252
      %p254 = scmp.ne.s32.totalorder %s243, %s244
      %p255 = scmp.eq.s32.totalorder %s22, 0
      %p256 = por %p254, %p255
      %p257 = scmp.ne.s32.totalorder %s243, %s244
      %p258 = scmp.eq.s32.totalorder %s23, 3
      %p259 = por %p257, %p258
      %p261 = scmp.ne.s32.totalorder %s244, %s260
      %p262 = scmp.eq.s32.totalorder %s23, 0
      %p263 = por %p261, %p262
      %p264 = scmp.le.s32.totalorder 1, %s17
      %p265 = scmp.lt.s32.totalorder %s17, 5
      %p266 = pnand %p264, %p265
      %p267 = pneg %p266
      // Predicated region
      $region9: #{tpu_custom_call.1} parent=5 // pred_check
        _
      $region10: #{tpu_custom_call.1} parent=5 // pred_check_branch
        %269 = sbr.rel (%p266) target = $region12
      $region11: #{tpu_custom_call.1} parent=5 // pred_region
        %s270 = ssub.s32 %s17, 1
        // Predicated region
        $region13: #{tpu_custom_call.1} parent=11 // pred_check
          %p271 = pneg %p104
        $region14: #{tpu_custom_call.1} parent=11 // pred_check_branch
          %273 = sbr.rel (%p271) target = $region16
        $region15: #{tpu_custom_call.1} parent=11 // pred_region
          _
        $region16: #{tpu_custom_call.1} parent=11 // pred_fallthru
          _
        // Predicated region
        $region17: #{tpu_custom_call.1} parent=11 // pred_check
          %p274 = pneg %p125
        $region18: #{tpu_custom_call.1} parent=11 // pred_check_branch
          %276 = sbr.rel (%p274) target = $region20
        $region19: #{tpu_custom_call.1} parent=11 // pred_region
          _
        $region20: #{tpu_custom_call.1} parent=11 // pred_fallthru
          _
        // Predicated region
        $region21: #{tpu_custom_call.1} parent=11 // pred_check
          %p277 = pneg %p146
        $region22: #{tpu_custom_call.1} parent=11 // pred_check_branch
          %279 = sbr.rel (%p277) target = $region24
        $region23: #{tpu_custom_call.1} parent=11 // pred_region
          _
        $region24: #{tpu_custom_call.1} parent=11 // pred_fallthru
          _
        // Predicated region
        $region25: #{tpu_custom_call.1} parent=11 // pred_check
          %p280 = pneg %p167
        $region26: #{tpu_custom_call.1} parent=11 // pred_check_branch
          %282 = sbr.rel (%p280) target = $region28
        $region27: #{tpu_custom_call.1} parent=11 // pred_region
          _
        $region28: #{tpu_custom_call.1} parent=11 // pred_fallthru
          _
        // Predicated region
        $region29: #{tpu_custom_call.1} parent=11 // pred_check
          %p283 = pneg %p188
        $region30: #{tpu_custom_call.1} parent=11 // pred_check_branch
          %285 = sbr.rel (%p283) target = $region32
        $region31: #{tpu_custom_call.1} parent=11 // pred_region
          _
        $region32: #{tpu_custom_call.1} parent=11 // pred_fallthru
          _
        // Predicated region
        $region33: #{tpu_custom_call.1} parent=11 // pred_check
          %p286 = pneg %p209
        $region34: #{tpu_custom_call.1} parent=11 // pred_check_branch
          %288 = sbr.rel (%p286) target = $region36
        $region35: #{tpu_custom_call.1} parent=11 // pred_region
          %s290 = ssub.s32 512, 512
          %291 = vsyncadd [#allocation5], %s290
          %s292 = sshll.u32 [#allocation4], 4
          %s293 = int_to_ptr.vmem [resolvable:$true] %s292
          %298 = dma.hbm_to_vmem [thread:$0]  %s7, 512, %s293, [#allocation5], 128, 128, 8
        $region36: #{tpu_custom_call.1} parent=11 // pred_fallthru
          _
        // Predicated region
        $region37: #{tpu_custom_call.1} parent=11 // pred_check
          %p299 = pneg %p230
        $region38: #{tpu_custom_call.1} parent=11 // pred_check_branch
          %301 = sbr.rel (%p299) target = $region40
        $region39: #{tpu_custom_call.1} parent=11 // pred_region
          _
        $region40: #{tpu_custom_call.1} parent=11 // pred_fallthru
          _
      $region12: #{tpu_custom_call.1} parent=5 // pred_fallthru
        _
      %p302 = scmp.lt.s32.totalorder %s17, 4
      // Predicated region
      $region41: #{tpu_custom_call.1} parent=5 // pred_check
        %p303 = pneg %p302
      $region42: #{tpu_custom_call.1} parent=5 // pred_check_branch
        %305 = sbr.rel (%p303) target = $region44
      $region43: #{tpu_custom_call.1} parent=5 // pred_region
        // Predicated region
        $region45: #{tpu_custom_call.1} parent=43 // pred_check
          %p306 = pneg %p51
        $region46: #{tpu_custom_call.1} parent=43 // pred_check_branch
          %308 = sbr.rel (%p306) target = $region48
        $region47: #{tpu_custom_call.1} parent=43 // pred_region
          %s309 = sand.u32 %s41, 1
          %s310 = sand.u32 %s41, 1
          %s311 = smul.addr %s310, 8
          %s312 = scalar_lea.vmem [#allocation3], %s311
          %s313 = smul.u32 2, %s24
          %s314 = smul.addr %s313, 4
          %s315 = sadd.s32 %s25, %s314
          %s316 = smul.addr %s315, 4
          %s317 = scalar_lea.vmem %s0, %s316
          // Predicated region
          $region49: #{tpu_custom_call.1} parent=47 // pred_check
            _
          $region50: #{tpu_custom_call.1} parent=47 // pred_check_branch
            %319 = sbr.rel (0) target = $region52
          $region51: #{tpu_custom_call.1} parent=47 // pred_region
            // Predicated region
            $region53: #{tpu_custom_call.1} parent=51 // pred_check
              _
            $region54: #{tpu_custom_call.1} parent=51 // pred_check_branch
              %321 = sbr.rel target = $region56
            $region55: #{tpu_custom_call.1} parent=51 // pred_region
              // Predicated region
              $region68: #{tpu_custom_call.1} parent=55 // pred_check
                _
              $region69: #{tpu_custom_call.1} parent=55 // pred_check_branch
                %339 = sbr.rel (0) target = $region71
              $region70: #{tpu_custom_call.1} parent=55 // pred_region
                loop: start=0, step=1, limit=1
                $region72: #{tpu_custom_call.1} parent=70 // loop_pre_header
                  _
                $region73: #{tpu_custom_call.1} parent=70 // loop_header
                  %s341 = sphi 0, %s345
                  %p342 = scmp.ge.s32.totalorder %s341, 1
                  %s346 = sphi %s317, %s317
                  %s347 = sphi %s312, %s312
                $region74: #{tpu_custom_call.1} parent=70 // loop_header_branch
                  %344 = sbr.rel (%p342) target = $region78
                $region75: #{tpu_custom_call.1} parent=70 // loop_body
                  _
                $region76: #{tpu_custom_call.1} parent=70 // loop_footer
                  %s345 = sadd.s32 1, %s341
                $region77: #{tpu_custom_call.1} parent=70 // loop_footer_branch
                  %340 = sbr.rel target = $region73
                $region78: #{tpu_custom_call.1} parent=70 // loop_exit
                  _
                %s349 = ssub.s32 16, 1
                loop: start=0, step=1, limit=1
                $region79: #{tpu_custom_call.1} parent=70 // loop_pre_header
                  _
                $region80: #{tpu_custom_call.1} parent=70 // loop_header
                  %s351 = sphi 0, %s355
                  %p352 = scmp.ge.s32.totalorder %s351, 1
                  %s356 = sphi %s317, %s317
                  %s357 = sphi %s312, %s312
                $region81: #{tpu_custom_call.1} parent=70 // loop_header_branch
                  %354 = sbr.rel (%p352) target = $region85
                $region82: #{tpu_custom_call.1} parent=70 // loop_body
                  %v358 = vld [vmem:[%s356] sm:%s349]
                  %359 = vst [vmem:[%s357] sm:%s349] %v358
                  %v360 = vld [vmem:[%s356 + $0x10] sm:%s349]
                  %361 = vst [vmem:[%s357 + $0x4] sm:%s349] %v360
                $region83: #{tpu_custom_call.1} parent=70 // loop_footer
                  %s355 = sadd.s32 1, %s351
                $region84: #{tpu_custom_call.1} parent=70 // loop_footer_branch
                  %350 = sbr.rel target = $region80
                $region85: #{tpu_custom_call.1} parent=70 // loop_exit
                  _
              $region71: #{tpu_custom_call.1} parent=55 // pred_fallthru
                _
            $region56: #{tpu_custom_call.1} parent=51 // pred_fallthru
              _
            // Predicated region
            $region57: #{tpu_custom_call.1} parent=51 // pred_check
              _
            $region58: #{tpu_custom_call.1} parent=51 // pred_check_branch
              %323 = sbr.rel (0) target = $region60
            $region59: #{tpu_custom_call.1} parent=51 // pred_region
              %s325 = ssub.s32 16, 1
              loop: start=0, step=1, limit=1
              $region61: #{tpu_custom_call.1} parent=59 // loop_pre_header
                _
              $region62: #{tpu_custom_call.1} parent=59 // loop_header
                %s327 = sphi 0, %s331
                %p328 = scmp.ge.s32.totalorder %s327, 1
                %s332 = sphi %s317, %s317
                %s333 = sphi %s312, %s312
              $region63: #{tpu_custom_call.1} parent=59 // loop_header_branch
                %330 = sbr.rel (%p328) target = $region67
              $region64: #{tpu_custom_call.1} parent=59 // loop_body
                %v334 = vld [vmem:[%s332] sm:%s325]
                %335 = vst [vmem:[%s333] sm:%s325] %v334
                %v336 = vld [vmem:[%s332 + $0x10] sm:%s325]
                %337 = vst [vmem:[%s333 + $0x4] sm:%s325] %v336
              $region65: #{tpu_custom_call.1} parent=59 // loop_footer
                %s331 = sadd.s32 1, %s327
              $region66: #{tpu_custom_call.1} parent=59 // loop_footer_branch
                %326 = sbr.rel target = $region62
              $region67: #{tpu_custom_call.1} parent=59 // loop_exit
                _
            $region60: #{tpu_custom_call.1} parent=51 // pred_fallthru
              _
          $region52: #{tpu_custom_call.1} parent=47 // pred_fallthru
            _
          %362 = vnop
        $region48: #{tpu_custom_call.1} parent=43 // pred_fallthru
          _
        // Predicated region
        $region86: #{tpu_custom_call.1} parent=43 // pred_check
          %p363 = pneg %p77
        $region87: #{tpu_custom_call.1} parent=43 // pred_check_branch
          %365 = sbr.rel (%p363) target = $region89
        $region88: #{tpu_custom_call.1} parent=43 // pred_region
          %s366 = smul.u32 16, %s25
          %p367 = scmp.lt.s32.totalorder %s366, 63
          %s368 = scalar_select %p367, %s366, 63
          %s369 = smul.addr %s368, 4
          %s370 = scalar_lea.vmem %s1, %s369
          %s371 = smul.u32 16, %s25
        $region89: #{tpu_custom_call.1} parent=43 // pred_fallthru
          _
      $region44: #{tpu_custom_call.1} parent=5 // pred_fallthru
        _
      %p372 = scmp.le.s32.totalorder 1, %s17
      %p373 = scmp.lt.s32.totalorder %s17, 5
      %p374 = pnand %p372, %p373
      %p375 = pneg %p374
      // Predicated region
      $region90: #{tpu_custom_call.1} parent=5 // pred_check
        _
      $region91: #{tpu_custom_call.1} parent=5 // pred_check_branch
        %377 = sbr.rel (%p374) target = $region93
      $region92: #{tpu_custom_call.1} parent=5 // pred_region
        %s378 = ssub.s32 %s17, 1
        %s379 = sand.u32 %s44, 1
        %s380 = sand.u32 %s44, 1
        %s381 = smul.addr %s380, 8
        %s382 = scalar_lea.vmem [#allocation3], %s381
        // Predicated region
        $region94: #{tpu_custom_call.1} parent=92 // pred_check
          %p383 = pneg %p57
        $region95: #{tpu_custom_call.1} parent=92 // pred_check_branch
          %385 = sbr.rel (%p383) target = $region97
        $region96: #{tpu_custom_call.1} parent=92 // pred_region
          _
        $region97: #{tpu_custom_call.1} parent=92 // pred_fallthru
          _
        // Predicated region
        $region98: #{tpu_custom_call.1} parent=92 // pred_check
          %p386 = pneg %p209
        $region99: #{tpu_custom_call.1} parent=92 // pred_check_branch
          %388 = sbr.rel (%p386) target = $region101
        $region100: #{tpu_custom_call.1} parent=92 // pred_region
          %389 = dma.done [#allocation5], 512
        $region101: #{tpu_custom_call.1} parent=92 // pred_fallthru
          _
        %s390 = sand.u32 %s44, 1
        %s391 = sand.u32 %s44, 1
        %s392 = smul.addr %s391, 8
        %s393 = scalar_lea.vmem [#allocation3], %s392
        %p394 = pneg %p57
        %p395 = pneg %p54
        %s396 = smul.u32 16, %s27
        %p397 = scmp.lt.s32.totalorder %s396, 63
        %s398 = scalar_select %p397, %s396, 63
        %s399 = smul.addr %s398, 4
        %s400 = scalar_lea.vmem %s1, %s399
        %p401 = pneg %p83
        %p402 = pneg %p80
        %p403 = pneg %p104
        %p404 = pneg %p101
        %p405 = pneg %p125
        %p406 = pneg %p122
        %p407 = pneg %p146
        %p408 = pneg %p143
        %p409 = pneg %p167
        %p410 = pneg %p164
        %p411 = pneg %p188
        %p412 = pneg %p185
        %p413 = pneg %p209
        %p414 = pneg %p206
        %p415 = pneg %p230
        %p416 = pneg %p227
        %p417 = pneg %p256
        %p418 = pneg %p253
        %s419 = smul.u32 2, %s26
        %s420 = smul.u32 16, %s27
        %p421 = scmp.lt.s32.totalorder %s420, 63
        %s422 = scalar_select %p421, %s420, 63
        %s423 = smul.addr %s422, 4
        %s424 = scalar_lea.vmem %s1, %s423
        %s425 = smul.u32 16, %s27
        %s426 = smul.u32 2, %s26
        %p428 = scmp.eq.s32.totalorder %s27, 0
        // Predicated region
        $region102: #{tpu_custom_call.1} parent=92 // pred_check
          %p429 = pneg %p428
        $region103: #{tpu_custom_call.1} parent=92 // pred_check_branch
          %431 = sbr.rel (%p429) target = $region105
        $region104: #{tpu_custom_call.1} parent=92 // pred_region
          %432 = vst [vmem:[#allocation2] sm:$0xff] 0.0
          %433 = vst [vmem:[#allocation2 + $0x8] sm:$0xff] 0.0
        $region105: #{tpu_custom_call.1} parent=92 // pred_fallthru
          _
        %v434 = vld [vmem:[#allocation2] sm:$0xff]
        %v435 = vld [vmem:[#allocation2 + $0x8] sm:$0xff]
        %v436 = vld [vmem:[%s382] sm:$0xf]
        %v437 = vld [vmem:[%s382 + $0x4] sm:$0xf]
        %v438 = vld [vmem:[%s424] sm:$0xf]
        %v439 = vld [vmem:[%s424 + $0x4] sm:$0xf]
        %v440 = vld [vmem:[%s424 + $0x8] sm:$0xf]
        %v441 = vld [vmem:[%s424 + $0xc] sm:$0xf]
        %v442 = vld [vmem:[%s424 + $0x10] sm:$0xf]
        %v443 = vld [vmem:[%s424 + $0x14] sm:$0xf]
        %v444 = vld [vmem:[%s424 + $0x18] sm:$0xf]
        %v445 = vld [vmem:[%s424 + $0x1c] sm:$0xf]
        %v446 = vld [vmem:[%s424 + $0x20] sm:$0xf]
        %v447 = vld [vmem:[%s424 + $0x24] sm:$0xf]
        %v448 = vld [vmem:[%s424 + $0x28] sm:$0xf]
        %v449 = vld [vmem:[%s424 + $0x2c] sm:$0xf]
        %v450 = vld [vmem:[%s424 + $0x30] sm:$0xf]
        %v451 = vld [vmem:[%s424 + $0x34] sm:$0xf]
        %v452 = vld [vmem:[%s424 + $0x38] sm:$0xf]
        %v453 = vld [vmem:[%s424 + $0x3c] sm:$0xf]
        %v456 = vunpack.c.l.b16 %v436
        %v457 = vunpack.c.l.b16 %v437
        %v458 = vpack.c.b16 %v457, %v456
        %v476 = vunpack.c.l.b16 %v438
        %v477 = vunpack.c.l.b16 %v439
        %v478 = vunpack.c.l.b16 %v440
        %v479 = vunpack.c.l.b16 %v441
        %v480 = vunpack.c.l.b16 %v442
        %v481 = vunpack.c.l.b16 %v443
        %v482 = vunpack.c.l.b16 %v444
        %v483 = vunpack.c.l.b16 %v445
        %v484 = vunpack.c.l.b16 %v446
        %v485 = vunpack.c.l.b16 %v447
        %v486 = vunpack.c.l.b16 %v448
        %v487 = vunpack.c.l.b16 %v449
        %v488 = vunpack.c.l.b16 %v450
        %v489 = vunpack.c.l.b16 %v451
        %v490 = vunpack.c.l.b16 %v452
        %v491 = vunpack.c.l.b16 %v453
        %v492 = vpack.c.b16 %v477, %v476
        %v493 = vpack.c.b16 %v479, %v478
        %v494 = vpack.c.b16 %v481, %v480
        %v495 = vpack.c.b16 %v483, %v482
        %v496 = vpack.c.b16 %v485, %v484
        %v497 = vpack.c.b16 %v487, %v486
        %v498 = vpack.c.b16 %v489, %v488
        %v499 = vpack.c.b16 %v491, %v490
        %508 = vmatprep.subr.bf16.mxu0 0
        %509 = vmatpush1.bf16.msra.mxu0 %v499
        %510 = vmatprep.subr.bf16.mxu0 0
        %511 = vmatpush1.bf16.msra.mxu0 %v498
        %512 = vmatprep.subr.bf16.mxu0 0
        %513 = vmatpush1.bf16.msra.mxu0 %v497
        %514 = vmatprep.subr.bf16.mxu0 0
        %515 = vmatpush1.bf16.msra.mxu0 %v496
        %516 = vmatprep.subr.bf16.mxu0 0
        %517 = vmatpush1.bf16.msra.mxu0 %v495
        %518 = vmatprep.subr.bf16.mxu0 0
        %519 = vmatpush1.bf16.msra.mxu0 %v494
        %520 = vmatprep.subr.bf16.mxu0 0
        %521 = vmatpush1.bf16.msra.mxu0 %v493
        %522 = vmatprep.subr.bf16.mxu0 0
        %523 = vmatpush1.bf16.msra.mxu0 %v492
        %524 = vmatprep.subr.bf16.mxu0 0
        %525 = vmatpush2.bf16.msra.mxu0 0
        %526 = vmatprep.subr.bf16.mxu0 0
        %527 = vmatpush2.bf16.msra.mxu0 0
        %528 = vmatprep.subr.bf16.mxu0 0
        %529 = vmatpush2.bf16.msra.mxu0 0
        %530 = vmatprep.subr.bf16.mxu0 0
        %531 = vmatpush2.bf16.msra.mxu0 0
        %532 = vmatprep.subr.bf16.mxu0 0
        %533 = vmatpush2.bf16.msra.mxu0 0
        %534 = vmatprep.subr.bf16.mxu0 0
        %535 = vmatpush2.bf16.msra.mxu0 0
        %536 = vmatprep.subr.bf16.mxu0 0
        %537 = vmatpush2.bf16.msra.mxu0 0
        %538 = vmatprep.subr.bf16.mxu0 0
        %539 = vmatpush2.bf16.msra.mxu0 0
        %540 = vmatprep.mubr.bf16.mxu0 0
        %541 = vmatmul.mubr.bf16.gmra.mxu0 %v458
        %v542 = vpop.f32.mrf.mxu0
        %v543 = vadd.f32 0.0, %v542
        %v544 = vpop.f32.mrf.mxu0
        %v545 = vpop.f32.mrf.mxu0
        %v546 = vadd.f32 0.0, %v545
        %v547 = vpop.f32.mrf.mxu0
        %548 = vdwg.mxu0
        %v549 = vadd.f32 %v434, %v543
        %v550 = vadd.f32 %v435, %v546
        %551 = vst [vmem:[#allocation2] sm:$0xff] %v549
        %552 = vst [vmem:[#allocation2 + $0x8] sm:$0xff] %v550
        %p553 = scmp.eq.s32.totalorder %s27, 3
        // Predicated region
        $region106: #{tpu_custom_call.1} parent=92 // pred_check
          %p554 = pneg %p553
        $region107: #{tpu_custom_call.1} parent=92 // pred_check_branch
          %556 = sbr.rel (%p554) target = $region109
        $region108: #{tpu_custom_call.1} parent=92 // pred_region
          %v557 = vld [vmem:[#allocation2] sm:$0xff]
          %v558 = vld [vmem:[#allocation2 + $0x8] sm:$0xff]
          %v559 = vld [vmem:[%s2] sm:$0x1]
          %v561 = vlaneseq
          %v562 = vshrl.u32 %v561, 7
          %v563 = vsub.s32 0, %v562
          %v564 = vrot.slane %v559, %v563
          %v566 = vadd.f32 %v557, %v564
          %v567 = vadd.f32 %v558, %v564
          %vm568 = vcmp.gt.f32.partialorder %v566, 0.0
          %vm569 = vcmp.gt.f32.partialorder %v567, 0.0
          %v570 = vmul.f32 %v566, 0.2
          %v571 = vmul.f32 %v567, 0.2
          %v572 = vsel %vm568, %v566, %v570
          %v573 = vsel %vm569, %v567, %v571
          %v574 = vld [vmem:[%s3] sm:$0xff]
          %v575 = vld [vmem:[%s3 + $0x8] sm:$0xff]
          %v576 = vld [vmem:[%s3 + $0x10] sm:$0xff]
          %v577 = vld [vmem:[%s3 + $0x18] sm:$0xff]
          %v578 = vld [vmem:[%s3 + $0x20] sm:$0xff]
          %v579 = vld [vmem:[%s3 + $0x28] sm:$0xff]
          %v580 = vld [vmem:[%s3 + $0x30] sm:$0xff]
          %v581 = vld [vmem:[%s3 + $0x38] sm:$0xff]
          %v582 = vld [vmem:[%s3 + $0x40] sm:$0xff]
          %v583 = vld [vmem:[%s3 + $0x48] sm:$0xff]
          %v584 = vld [vmem:[%s3 + $0x50] sm:$0xff]
          %v585 = vld [vmem:[%s3 + $0x58] sm:$0xff]
          %v586 = vld [vmem:[%s3 + $0x60] sm:$0xff]
          %v587 = vld [vmem:[%s3 + $0x68] sm:$0xff]
          %v588 = vld [vmem:[%s3 + $0x70] sm:$0xff]
          %v589 = vld [vmem:[%s3 + $0x78] sm:$0xff]
          %v590 = vld [vmem:[%s4] sm:$0x1]
          %v592 = vlaneseq
          %v593 = vshrl.u32 %v592, 7
          %v594 = vsub.s32 0, %v593
          %v595 = vrot.slane %v590, %v594
          %597 = vmatprep.subr.mxu0 0.0
          %598 = vmatpush1.msra.mxu0 %v589
          %599 = vmatprep.subr.mxu0 0.0
          %600 = vmatpush1.msra.mxu0 %v588
          %601 = vmatprep.subr.mxu0 0.0
          %602 = vmatpush1.msra.mxu0 %v587
          %603 = vmatprep.subr.mxu0 0.0
          %604 = vmatpush1.msra.mxu0 %v586
          %605 = vmatprep.subr.mxu0 0.0
          %606 = vmatpush1.msra.mxu0 %v585
          %607 = vmatprep.subr.mxu0 0.0
          %608 = vmatpush1.msra.mxu0 %v584
          %609 = vmatprep.subr.mxu0 0.0
          %610 = vmatpush1.msra.mxu0 %v583
          %611 = vmatprep.subr.mxu0 0.0
          %612 = vmatpush1.msra.mxu0 %v582
          %613 = vmatprep.subr.mxu0 0.0
          %614 = vmatpush1.msra.mxu0 %v581
          %615 = vmatprep.subr.mxu0 0.0
          %616 = vmatpush1.msra.mxu0 %v580
          %617 = vmatprep.subr.mxu0 0.0
          %618 = vmatpush1.msra.mxu0 %v579
          %619 = vmatprep.subr.mxu0 0.0
          %620 = vmatpush1.msra.mxu0 %v578
          %621 = vmatprep.subr.mxu0 0.0
          %622 = vmatpush1.msra.mxu0 %v577
          %623 = vmatprep.subr.mxu0 0.0
          %624 = vmatpush1.msra.mxu0 %v576
          %625 = vmatprep.subr.mxu0 0.0
          %626 = vmatpush1.msra.mxu0 %v575
          %627 = vmatprep.subr.mxu0 0.0
          %628 = vmatpush1.msra.mxu0 %v574
          %629 = vmatprep.subr.mxu0 0.0
          %630 = vmatpush2.msra.mxu0 0.0
          %631 = vmatprep.subr.mxu0 0.0
          %632 = vmatpush2.msra.mxu0 0.0
          %633 = vmatprep.subr.mxu0 0.0
          %634 = vmatpush2.msra.mxu0 0.0
          %635 = vmatprep.subr.mxu0 0.0
          %636 = vmatpush2.msra.mxu0 0.0
          %637 = vmatprep.subr.mxu0 0.0
          %638 = vmatpush2.msra.mxu0 0.0
          %639 = vmatprep.subr.mxu0 0.0
          %640 = vmatpush2.msra.mxu0 0.0
          %641 = vmatprep.subr.mxu0 0.0
          %642 = vmatpush2.msra.mxu0 0.0
          %643 = vmatprep.subr.mxu0 0.0
          %644 = vmatpush2.msra.mxu0 0.0
          %645 = vmatprep.subr.mxu0 0.0
          %646 = vmatpush2.msra.mxu0 0.0
          %647 = vmatprep.subr.mxu0 0.0
          %648 = vmatpush2.msra.mxu0 0.0
          %649 = vmatprep.subr.mxu0 0.0
          %650 = vmatpush2.msra.mxu0 0.0
          %651 = vmatprep.subr.mxu0 0.0
          %652 = vmatpush2.msra.mxu0 0.0
          %653 = vmatprep.subr.mxu0 0.0
          %654 = vmatpush2.msra.mxu0 0.0
          %655 = vmatprep.subr.mxu0 0.0
          %656 = vmatpush2.msra.mxu0 0.0
          %657 = vmatprep.subr.mxu0 0.0
          %658 = vmatpush2.msra.mxu0 0.0
          %659 = vmatprep.subr.mxu0 0.0
          %660 = vmatpush2.msra.mxu0 0.0
          %661 = vmatprep.mubr.f32.mxu0 0.0
          %662 = vmatmul.mubr.f32.gmra.mxu0 %v572
          %v663 = vpop.f32.mrf.mxu0
          %v664 = vadd.f32 %v595, %v663
          %v665 = vpop.f32.mrf.mxu0
          %666 = vmatprep.mubr.f32.mxu0 0.0
          %667 = vmatmul.mubr.f32.gmra.mxu0 %v573
          %v668 = vpop.f32.mrf.mxu0
          %v669 = vadd.f32 %v595, %v668
          %v670 = vpop.f32.mrf.mxu0
          %671 = vdwg.mxu0
          %vm672 = vcmp.gt.f32.partialorder %v664, 0.0
          %vm673 = vcmp.gt.f32.partialorder %v669, 0.0
          %v674 = vmul.f32 %v664, 0.2
          %v675 = vmul.f32 %v669, 0.2
          %v676 = vsel %vm672, %v664, %v674
          %v677 = vsel %vm673, %v669, %v675
          %v678 = vld [vmem:[%s5] sm:$0xff]
          %v679 = vld [vmem:[%s5 + $0x8] sm:$0xff]
          %v680 = vld [vmem:[%s5 + $0x10] sm:$0xff]
          %v681 = vld [vmem:[%s5 + $0x18] sm:$0xff]
          %v682 = vld [vmem:[%s5 + $0x20] sm:$0xff]
          %v683 = vld [vmem:[%s5 + $0x28] sm:$0xff]
          %v684 = vld [vmem:[%s5 + $0x30] sm:$0xff]
          %v685 = vld [vmem:[%s5 + $0x38] sm:$0xff]
          %v686 = vld [vmem:[%s6] sm:$0x1]
          %v688 = vlaneseq
          %v689 = vshrl.u32 %v688, 7
          %v690 = vsub.s32 0, %v689
          %v691 = vrot.slane %v686, %v690
          %vm693 = vcmask 523264
          %v695 = vsel %vm693, %v676, 0
          %v698 = vsel %vm693, %v677, 0
          %700 = vmatprep.subr.mxu0 0.0
          %701 = vmatpush1.msra.mxu0 0.0
          %702 = vmatprep.subr.mxu0 0.0
          %703 = vmatpush1.msra.mxu0 0.0
          %704 = vmatprep.subr.mxu0 0.0
          %705 = vmatpush1.msra.mxu0 0.0
          %706 = vmatprep.subr.mxu0 0.0
          %707 = vmatpush1.msra.mxu0 0.0
          %708 = vmatprep.subr.mxu0 0.0
          %709 = vmatpush1.msra.mxu0 0.0
          %710 = vmatprep.subr.mxu0 0.0
          %711 = vmatpush1.msra.mxu0 0.0
          %712 = vmatprep.subr.mxu0 0.0
          %713 = vmatpush1.msra.mxu0 0.0
          %714 = vmatprep.subr.mxu0 0.0
          %715 = vmatpush1.msra.mxu0 0.0
          %716 = vmatprep.subr.mxu0 0.0
          %717 = vmatpush1.msra.mxu0 %v685
          %718 = vmatprep.subr.mxu0 0.0
          %719 = vmatpush1.msra.mxu0 %v684
          %720 = vmatprep.subr.mxu0 0.0
          %721 = vmatpush1.msra.mxu0 %v683
          %722 = vmatprep.subr.mxu0 0.0
          %723 = vmatpush1.msra.mxu0 %v682
          %724 = vmatprep.subr.mxu0 0.0
          %725 = vmatpush1.msra.mxu0 %v681
          %726 = vmatprep.subr.mxu0 0.0
          %727 = vmatpush1.msra.mxu0 %v680
          %728 = vmatprep.subr.mxu0 0.0
          %729 = vmatpush1.msra.mxu0 %v679
          %730 = vmatprep.subr.mxu0 0.0
          %731 = vmatpush1.msra.mxu0 %v678
          %732 = vmatprep.subr.mxu0 0.0
          %733 = vmatpush2.msra.mxu0 0.0
          %734 = vmatprep.subr.mxu0 0.0
          %735 = vmatpush2.msra.mxu0 0.0
          %736 = vmatprep.subr.mxu0 0.0
          %737 = vmatpush2.msra.mxu0 0.0
          %738 = vmatprep.subr.mxu0 0.0
          %739 = vmatpush2.msra.mxu0 0.0
          %740 = vmatprep.subr.mxu0 0.0
          %741 = vmatpush2.msra.mxu0 0.0
          %742 = vmatprep.subr.mxu0 0.0
          %743 = vmatpush2.msra.mxu0 0.0
          %744 = vmatprep.subr.mxu0 0.0
          %745 = vmatpush2.msra.mxu0 0.0
          %746 = vmatprep.subr.mxu0 0.0
          %747 = vmatpush2.msra.mxu0 0.0
          %748 = vmatprep.subr.mxu0 0.0
          %749 = vmatpush2.msra.mxu0 0.0
          %750 = vmatprep.subr.mxu0 0.0
          %751 = vmatpush2.msra.mxu0 0.0
          %752 = vmatprep.subr.mxu0 0.0
          %753 = vmatpush2.msra.mxu0 0.0
          %754 = vmatprep.subr.mxu0 0.0
          %755 = vmatpush2.msra.mxu0 0.0
          %756 = vmatprep.subr.mxu0 0.0
          %757 = vmatpush2.msra.mxu0 0.0
          %758 = vmatprep.subr.mxu0 0.0
          %759 = vmatpush2.msra.mxu0 0.0
          %760 = vmatprep.subr.mxu0 0.0
          %761 = vmatpush2.msra.mxu0 0.0
          %762 = vmatprep.subr.mxu0 0.0
          %763 = vmatpush2.msra.mxu0 0.0
          %764 = vmatprep.mubr.f32.mxu0 0.0
          %765 = vmatmul.mubr.f32.gmra.mxu0 %v695
          %v766 = vpop.f32.mrf.mxu0
          %v767 = vadd.f32 %v691, %v766
          %v768 = vpop.f32.mrf.mxu0
          %769 = vmatprep.mubr.f32.mxu0 0.0
          %770 = vmatmul.mubr.f32.gmra.mxu0 %v698
          %v771 = vpop.f32.mrf.mxu0
          %v772 = vadd.f32 %v691, %v771
          %v773 = vpop.f32.mrf.mxu0
          %774 = vdwg.mxu0
          %vm775 = vcmp.gt.f32.partialorder %v767, 0.0
          %vm776 = vcmp.gt.f32.partialorder %v772, 0.0
          %v777 = vmul.f32 %v767, 0.2
          %v778 = vmul.f32 %v772, 0.2
          %v779 = vsel %vm775, %v767, %v777
          %v780 = vsel %vm776, %v772, %v778
          %v781 = vld [vmem:[#allocation4] sm:$0xff]
          %v782 = vld [vmem:[#allocation4 + $0x8] sm:$0xff]
          %v783 = vld [vmem:[#allocation4 + $0x10] sm:$0xff]
          %v784 = vld [vmem:[#allocation4 + $0x18] sm:$0xff]
          %v785 = vld [vmem:[%s8] sm:$0x1]
          %v787 = vlaneseq
          %v788 = vshrl.u32 %v787, 7
          %v789 = vsub.s32 0, %v788
          %v790 = vrot.slane %v785, %v789
          %vm792 = vcmask 261120
          %v794 = vsel %vm792, %v779, 0
          %v797 = vsel %vm792, %v780, 0
          %799 = vmatprep.subr.mxu0 0.0
          %800 = vmatpush1.msra.mxu0 0.0
          %801 = vmatprep.subr.mxu0 0.0
          %802 = vmatpush1.msra.mxu0 0.0
          %803 = vmatprep.subr.mxu0 0.0
          %804 = vmatpush1.msra.mxu0 0.0
          %805 = vmatprep.subr.mxu0 0.0
          %806 = vmatpush1.msra.mxu0 0.0
          %807 = vmatprep.subr.mxu0 0.0
          %808 = vmatpush1.msra.mxu0 0.0
          %809 = vmatprep.subr.mxu0 0.0
          %810 = vmatpush1.msra.mxu0 0.0
          %811 = vmatprep.subr.mxu0 0.0
          %812 = vmatpush1.msra.mxu0 0.0
          %813 = vmatprep.subr.mxu0 0.0
          %814 = vmatpush1.msra.mxu0 0.0
          %815 = vmatprep.subr.mxu0 0.0
          %816 = vmatpush1.msra.mxu0 0.0
          %817 = vmatprep.subr.mxu0 0.0
          %818 = vmatpush1.msra.mxu0 0.0
          %819 = vmatprep.subr.mxu0 0.0
          %820 = vmatpush1.msra.mxu0 0.0
          %821 = vmatprep.subr.mxu0 0.0
          %822 = vmatpush1.msra.mxu0 0.0
          %823 = vmatprep.subr.mxu0 0.0
          %824 = vmatpush1.msra.mxu0 %v784
          %825 = vmatprep.subr.mxu0 0.0
          %826 = vmatpush1.msra.mxu0 %v783
          %827 = vmatprep.subr.mxu0 0.0
          %828 = vmatpush1.msra.mxu0 %v782
          %829 = vmatprep.subr.mxu0 0.0
          %830 = vmatpush1.msra.mxu0 %v781
          %831 = vmatprep.subr.mxu0 0.0
          %832 = vmatpush2.msra.mxu0 0.0
          %833 = vmatprep.subr.mxu0 0.0
          %834 = vmatpush2.msra.mxu0 0.0
          %835 = vmatprep.subr.mxu0 0.0
          %836 = vmatpush2.msra.mxu0 0.0
          %837 = vmatprep.subr.mxu0 0.0
          %838 = vmatpush2.msra.mxu0 0.0
          %839 = vmatprep.subr.mxu0 0.0
          %840 = vmatpush2.msra.mxu0 0.0
          %841 = vmatprep.subr.mxu0 0.0
          %842 = vmatpush2.msra.mxu0 0.0
          %843 = vmatprep.subr.mxu0 0.0
          %844 = vmatpush2.msra.mxu0 0.0
          %845 = vmatprep.subr.mxu0 0.0
          %846 = vmatpush2.msra.mxu0 0.0
          %847 = vmatprep.subr.mxu0 0.0
          %848 = vmatpush2.msra.mxu0 0.0
          %849 = vmatprep.subr.mxu0 0.0
          %850 = vmatpush2.msra.mxu0 0.0
          %851 = vmatprep.subr.mxu0 0.0
          %852 = vmatpush2.msra.mxu0 0.0
          %853 = vmatprep.subr.mxu0 0.0
          %854 = vmatpush2.msra.mxu0 0.0
          %855 = vmatprep.subr.mxu0 0.0
          %856 = vmatpush2.msra.mxu0 0.0
          %857 = vmatprep.subr.mxu0 0.0
          %858 = vmatpush2.msra.mxu0 0.0
          %859 = vmatprep.subr.mxu0 0.0
          %860 = vmatpush2.msra.mxu0 0.0
          %861 = vmatprep.subr.mxu0 0.0
          %862 = vmatpush2.msra.mxu0 0.0
          %863 = vmatprep.mubr.f32.mxu0 0.0
          %864 = vmatmul.mubr.f32.gmra.mxu0 %v794
          %v865 = vpop.f32.mrf.mxu0
          %v866 = vadd.f32 %v790, %v865
          %v867 = vpop.f32.mrf.mxu0
          %868 = vmatprep.mubr.f32.mxu0 0.0
          %869 = vmatmul.mubr.f32.gmra.mxu0 %v797
          %v870 = vpop.f32.mrf.mxu0
          %v871 = vadd.f32 %v790, %v870
          %v872 = vpop.f32.mrf.mxu0
          %873 = vdwg.mxu0
          %874 = vst [vmem:[#allocation7] sm:$0xff] %v866
          %875 = vst [vmem:[#allocation7 + $0x8] sm:$0xff] %v871
        $region109: #{tpu_custom_call.1} parent=92 // pred_fallthru
          _
        // Predicated region
        $region110: #{tpu_custom_call.1} parent=92 // pred_check
          %p876 = pneg %p253
        $region111: #{tpu_custom_call.1} parent=92 // pred_check_branch
          %878 = sbr.rel (%p876) target = $region113
        $region112: #{tpu_custom_call.1} parent=92 // pred_region
          %s879 = smul.u32 2, %s26
          %s881 = ssub.s32 256, 256
          %882 = vsyncadd [#allocation6], %s881
          %s883 = smul.addr %s879, 128
          %s884 = scalar_lea.hbm %s9, %s883
          %s885 = sshll.u32 [#allocation7], 4
          %s886 = int_to_ptr.vmem [resolvable:$true] %s885
          %891 = dma.vmem_to_hbm [thread:$0]  %s886, 256, %s884, [#allocation6], 128, 128, 8
        $region113: #{tpu_custom_call.1} parent=92 // pred_fallthru
          _
        // Predicated region
        $region114: #{tpu_custom_call.1} parent=92 // pred_check
          %p892 = pneg %p253
        $region115: #{tpu_custom_call.1} parent=92 // pred_check_branch
          %894 = sbr.rel (%p892) target = $region117
        $region116: #{tpu_custom_call.1} parent=92 // pred_region
          %895 = dma.done [#allocation6], 256
        $region117: #{tpu_custom_call.1} parent=92 // pred_fallthru
          _
      $region93: #{tpu_custom_call.1} parent=5 // pred_fallthru
        _
      %p896 = scmp.le.s32.totalorder 2, %s17
      // Predicated region
      $region118: #{tpu_custom_call.1} parent=5 // pred_check
        %p897 = pneg %p896
      $region119: #{tpu_custom_call.1} parent=5 // pred_check_branch
        %899 = sbr.rel (%p897) target = $region121
      $region120: #{tpu_custom_call.1} parent=5 // pred_region
        %s900 = ssub.s32 %s17, 2
      $region121: #{tpu_custom_call.1} parent=5 // pred_fallthru
        _
    $region6: #{tpu_custom_call.1} parent=1 // loop_footer
      %s21 = sadd.s32 1, %s17
    $region7: #{tpu_custom_call.1} parent=1 // loop_footer_branch
      %16 = sbr.rel target = $region3
    $region8: #{tpu_custom_call.1} parent=1 // loop_exit
      _
    %901 = vsyncpa [#allocation5], 1
    %s902 = scalar_lea.sflag [#allocation5], 1
    %903 = vsyncpa %s902, 1
    %904 = vsyncpa [#allocation6], 1
    %s905 = scalar_lea.sflag [#allocation6], 1
    %906 = vsyncpa %s905, 1

</llo_original>
